<compile_context>
chip_gen: v5e
topology: v5e:2x2
jax: 0.10.0
libtpu: 0.0.40
codegen_flags: <defaults>
</compile_context>

<pallas_src>
import math

import jax
import jax.numpy as jnp
from jax import lax
from jax.experimental import pallas as pl
from jax.experimental.pallas import tpu as pltpu


# ---------------------------------------------------------------------------
# Stage 1: fused head-major Q/K/V projection.
#   x  : (B, S, D)
#   w* : (H, D, dk)   (torch W.T split per head, done in the wrapper)
#   b* : (H, 1, dk)
#   out: q, k, v each (B, H, S, dk) in compute dtype
# ---------------------------------------------------------------------------
def _qkv_kernel(x_ref, wq_ref, bq_ref, wk_ref, bk_ref, wv_ref, bv_ref,
                q_ref, k_ref, v_ref):
    x = x_ref[...].astype(wq_ref.dtype)                      # (TS, D)

    def proj(w_ref, b_ref, o_ref):
        y = jnp.dot(x, w_ref[...], preferred_element_type=jnp.float32)
        o_ref[...] = (y + b_ref[...].astype(jnp.float32)).astype(o_ref.dtype)

    proj(wq_ref, bq_ref, q_ref)
    proj(wk_ref, bk_ref, k_ref)
    proj(wv_ref, bv_ref, v_ref)


# ---------------------------------------------------------------------------
# Stage 2: flash attention + per-head output projection (accumulated over H).
# grid = (B, S//TQ, H, S//TK); output block depends only on (B, q-tile).
# ---------------------------------------------------------------------------
def _make_attn_kernel(scale):
    def kernel(q_ref, k_ref, v_ref, wo_ref, bo_ref, o_ref,
               m_sc, l_sc, acc_sc, out_sc):
        h = pl.program_id(2)
        kv = pl.program_id(3)
        nh = pl.num_programs(2)
        nkv = pl.num_programs(3)

        @pl.when((h == 0) & (kv == 0))
        def _():
            out_sc[...] = jnp.zeros(out_sc.shape, jnp.float32)

        @pl.when(kv == 0)
        def _():
            m_sc[...] = jnp.full(m_sc.shape, -jnp.inf, jnp.float32)
            l_sc[...] = jnp.zeros(l_sc.shape, jnp.float32)
            acc_sc[...] = jnp.zeros(acc_sc.shape, jnp.float32)

        q = q_ref[...]                                        # (TQ, dk)
        k = k_ref[...]                                        # (TK, dk)
        v = v_ref[...]                                        # (TK, dk)

        # Scores: contract last dims directly -- no explicit K transpose.
        s = lax.dot_general(q, k, (((1,), (1,)), ((), ())),
                            preferred_element_type=jnp.float32) * scale

        m_prev = m_sc[...]
        m_new = jnp.maximum(m_prev, jnp.max(s, axis=-1, keepdims=True))
        alpha = jnp.exp(m_prev - m_new)
        p = jnp.exp(s - m_new)
        l_sc[...] = alpha * l_sc[...] + jnp.sum(p, axis=-1, keepdims=True)
        acc_sc[...] = alpha * acc_sc[...] + jnp.dot(
            p.astype(v.dtype), v, preferred_element_type=jnp.float32)
        m_sc[...] = m_new

        # Finalize this head: normalize and project through this head's
        # (dk, D) slice of W_o, accumulating across heads (no concat).
        @pl.when(kv == nkv - 1)
        def _():
            attn = acc_sc[...] * pl.reciprocal(l_sc[...], approx=True)
            out_sc[...] += jnp.dot(attn.astype(wo_ref.dtype), wo_ref[...],
                                   preferred_element_type=jnp.float32)

        @pl.when((h == nh - 1) & (kv == nkv - 1))
        def _():
            o_ref[...] = (out_sc[...] +
                          bo_ref[...].astype(jnp.float32)).astype(o_ref.dtype)

    return kernel


def multi_head_attention(x, params, *, num_heads,
                         seq_tile=None, q_tile=None, kv_tile=None,
                         compute_dtype=jnp.float32,
                         vmem_limit_bytes=48 * 1024 * 1024):
    """x: (B, S, D).  params: head-major weights (see __main__)."""
    B, S, D = x.shape
    assert D % num_heads == 0, "d_model must be divisible by num_heads"
    H = num_heads
    dk = D // H

    TS = seq_tile if seq_tile is not None else min(S, 128)
    TQ = q_tile if q_tile is not None else min(S, 128)
    TK = kv_tile if kv_tile is not None else min(S, 128)
    assert S % TS == 0 and S % TQ == 0 and S % TK == 0

    cdt = compute_dtype
    wq = params['wq'].astype(cdt)
    wk = params['wk'].astype(cdt)
    wv = params['wv'].astype(cdt)
    wo = params['wo'].astype(cdt)
    bq = params['bq'].astype(jnp.float32)
    bk = params['bk'].astype(jnp.float32)
    bv = params['bv'].astype(jnp.float32)
    bo = params['bo'].astype(jnp.float32)

    # ---- Stage 1: Q/K/V projection, head-major output (B, H, S, dk) ----
    w_spec = pl.BlockSpec((None, D, dk), lambda b, h, s: (h, 0, 0))
    b_spec = pl.BlockSpec((None, 1, dk), lambda b, h, s: (h, 0, 0))
    qkv_spec = pl.BlockSpec((None, None, TS, dk), lambda b, h, s: (b, h, s, 0))

    q, k, v = pl.pallas_call(
        _qkv_kernel,
        out_shape=[jax.ShapeDtypeStruct((B, H, S, dk), cdt) for _ in range(3)],
        grid_spec=pltpu.PrefetchScalarGridSpec(
            num_scalar_prefetch=0,
            grid=(B, H, S // TS),
            in_specs=[
                pl.BlockSpec((None, TS, D), lambda b, h, s: (b, s, 0)),
                w_spec, b_spec, w_spec, b_spec, w_spec, b_spec,
            ],
            out_specs=[qkv_spec, qkv_spec, qkv_spec],
        ),
        compiler_params=pltpu.CompilerParams(
            dimension_semantics=("parallel", "parallel", "parallel"),
            vmem_limit_bytes=vmem_limit_bytes),
    )(x, wq, bq, wk, bk, wv, bv)

    # ---- Stage 2: flash attention + output projection ----
    scale = 1.0 / math.sqrt(dk)
    out = pl.pallas_call(
        _make_attn_kernel(scale),
        out_shape=jax.ShapeDtypeStruct((B, S, D), x.dtype),
        grid_spec=pltpu.PrefetchScalarGridSpec(
            num_scalar_prefetch=0,
            grid=(B, S // TQ, H, S // TK),
            in_specs=[
                pl.BlockSpec((None, None, TQ, dk),
                             lambda b, qi, h, kv: (b, h, qi, 0)),
                pl.BlockSpec((None, None, TK, dk),
                             lambda b, qi, h, kv: (b, h, kv, 0)),
                pl.BlockSpec((None, None, TK, dk),
                             lambda b, qi, h, kv: (b, h, kv, 0)),
                pl.BlockSpec((None, dk, D),
                             lambda b, qi, h, kv: (h, 0, 0)),
                pl.BlockSpec((1, D),
                             lambda b, qi, h, kv: (0, 0)),
            ],
            out_specs=pl.BlockSpec((None, TQ, D),
                                   lambda b, qi, h, kv: (b, qi, 0)),
            scratch_shapes=[
                pltpu.VMEM((TQ, 1), jnp.float32),    # running max
                pltpu.VMEM((TQ, 1), jnp.float32),    # running denom
                pltpu.VMEM((TQ, dk), jnp.float32),   # per-head accumulator
                pltpu.VMEM((TQ, D), jnp.float32),    # output-proj accumulator
            ],
        ),
        compiler_params=pltpu.CompilerParams(
            dimension_semantics=("parallel", "parallel",
                                 "arbitrary", "arbitrary"),
            vmem_limit_bytes=vmem_limit_bytes),
    )(q, k, v, wo, bo)

    return out


# ---------------------------------------------------------------------------
# Pure-JAX reference mirroring the PyTorch forward.
# ---------------------------------------------------------------------------
def reference_mha(x, params, num_heads):
    B, S, D = x.shape
    H = num_heads
    dk = D // H

    def full_w(w_hm):                       # (H, D, dk) -> (D, D) as x @ W
        return jnp.transpose(w_hm, (1, 0, 2)).reshape(D, D)

    wq, wk, wv = (full_w(params[n]) for n in ('wq', 'wk', 'wv'))
    bq = params['bq'].reshape(1, 1, D)
    bk = params['bk'].reshape(1, 1, D)
    bv = params['bv'].reshape(1, 1, D)
    wo = params['wo'].reshape(D, D)
    bo = params['bo'].reshape(1, 1, D)

    q = (x @ wq + bq).reshape(B, S, H, dk).transpose(0, 2, 1, 3)
    k = (x @ wk + bk).reshape(B, S, H, dk).transpose(0, 2, 1, 3)
    v = (x @ wv + bv).reshape(B, S, H, dk).transpose(0, 2, 1, 3)
    scores = jnp.einsum('bhqd,bhkd->bhqk', q, k) / math.sqrt(dk)
    p = jax.nn.softmax(scores, axis=-1)
    attn = jnp.einsum('bhqk,bhkd->bhqd', p, v)
    attn = attn.transpose(0, 2, 1, 3).reshape(B, S, D)
    return attn @ wo + bo


if __name__ == "__main__":
    B, S, D, NH = 2, 16, 32, 4          # small shapes; 2 q-tiles x 2 kv-tiles
    dk = D // NH

    key = jax.random.PRNGKey(0)
    ks = jax.random.split(key, 9)
    bound = 1.0 / math.sqrt(D)

    def u(k, shape):
        return jax.random.uniform(k, shape, jnp.float32, -bound, bound)

    params = dict(
        wq=u(ks[0], (NH, D, dk)), bq=u(ks[1], (NH, 1, dk)),
        wk=u(ks[2], (NH, D, dk)), bk=u(ks[3], (NH, 1, dk)),
        wv=u(ks[4], (NH, D, dk)), bv=u(ks[5], (NH, 1, dk)),
        wo=u(ks[6], (NH, dk, D)), bo=u(ks[7], (1, D)),
    )
    x = jax.random.normal(ks[8], (B, S, D), jnp.float32)

    out = multi_head_attention(x, params, num_heads=NH,
                               seq_tile=8, q_tile=8, kv_tile=8,
                               compute_dtype=jnp.float32)
    out = jax.block_until_ready(out)

    ref = reference_mha(x, params, num_heads=NH)
    assert out.shape == (B, S, D)
    max_err = float(jnp.max(jnp.abs(out - ref)))
    assert jnp.allclose(out, ref, atol=2e-3, rtol=2e-3), \
        f"mismatch vs JAX reference, max abs err = {max_err}"
    print("KERNEL_OK")
</pallas_src>

<mosaic_0001>
module attributes {stable_mosaic.version = 11 : i64} {
  func.func @_qkv_kernel(%arg0: i32, %arg1: i32, %arg2: i32, %arg3: memref<1x8x32xf32, #tpu.memory_space<vmem>>, %arg4: memref<1x32x8xf32, #tpu.memory_space<vmem>>, %arg5: memref<1x1x8xf32, #tpu.memory_space<vmem>>, %arg6: memref<1x32x8xf32, #tpu.memory_space<vmem>>, %arg7: memref<1x1x8xf32, #tpu.memory_space<vmem>>, %arg8: memref<1x32x8xf32, #tpu.memory_space<vmem>>, %arg9: memref<1x1x8xf32, #tpu.memory_space<vmem>>, %arg10: memref<1x1x8x8xf32, #tpu.memory_space<vmem>>, %arg11: memref<1x1x8x8xf32, #tpu.memory_space<vmem>>, %arg12: memref<1x1x8x8xf32, #tpu.memory_space<vmem>>) attributes {dimension_semantics = [#tpu.dimension_semantics<parallel>, #tpu.dimension_semantics<parallel>, #tpu.dimension_semantics<parallel>], iteration_bounds = array<i64: 2, 4, 2>, scalar_prefetch = 0 : i64, scratch_operands = 0 : i64, tpu.core_type = #tpu.core_type<tc>, window_params = [{transform_indices = @transform_0, window_bounds = array<i64: 1, 8, 32>}, {transform_indices = @transform_1, window_bounds = array<i64: 1, 32, 8>}, {transform_indices = @transform_2, window_bounds = array<i64: 1, 1, 8>}, {transform_indices = @transform_3, window_bounds = array<i64: 1, 32, 8>}, {transform_indices = @transform_4, window_bounds = array<i64: 1, 1, 8>}, {transform_indices = @transform_5, window_bounds = array<i64: 1, 32, 8>}, {transform_indices = @transform_6, window_bounds = array<i64: 1, 1, 8>}, {transform_indices = @transform_7, window_bounds = array<i64: 1, 1, 8, 8>}, {transform_indices = @transform_8, window_bounds = array<i64: 1, 1, 8, 8>}, {transform_indices = @transform_9, window_bounds = array<i64: 1, 1, 8, 8>}]} {
    %c0 = arith.constant 0 : index
    %c0_0 = arith.constant 0 : index
    %c0_1 = arith.constant 0 : index
    %0 = vector.load %arg3[%c0, %c0_0, %c0_1] : memref<1x8x32xf32, #tpu.memory_space<vmem>>, vector<1x8x32xf32>
    %1 = vector.shape_cast %0 : vector<1x8x32xf32> to vector<8x32xf32>
    %c0_2 = arith.constant 0 : index
    %c0_3 = arith.constant 0 : index
    %c0_4 = arith.constant 0 : index
    %2 = vector.load %arg4[%c0_2, %c0_3, %c0_4] : memref<1x32x8xf32, #tpu.memory_space<vmem>>, vector<1x32x8xf32>
    %3 = vector.shape_cast %2 : vector<1x32x8xf32> to vector<32x8xf32>
    %cst = arith.constant dense<0.000000e+00> : vector<8x8xf32>
    %4 = tpu.matmul %1, %3, %cst {dimension_numbers = #tpu.dot_dimension_numbers<[1], [0], [0], [1], [0, 0, 1, 1], [], []>} : vector<8x32xf32>, vector<32x8xf32>, vector<8x8xf32> -> vector<8x8xf32>
    %c0_5 = arith.constant 0 : index
    %c0_6 = arith.constant 0 : index
    %c0_7 = arith.constant 0 : index
    %5 = vector.load %arg5[%c0_5, %c0_6, %c0_7] : memref<1x1x8xf32, #tpu.memory_space<vmem>>, vector<1x1x8xf32>
    %6 = vector.shape_cast %5 : vector<1x1x8xf32> to vector<1x8xf32>
    %7 = vector.broadcast %6 : vector<1x8xf32> to vector<8x8xf32>
    %8 = arith.addf %4, %7 : vector<8x8xf32>
    %c0_8 = arith.constant 0 : index
    %c0_9 = arith.constant 0 : index
    %c0_10 = arith.constant 0 : index
    %c0_11 = arith.constant 0 : index
    %9 = vector.load %arg10[%c0_8, %c0_9, %c0_10, %c0_11] : memref<1x1x8x8xf32, #tpu.memory_space<vmem>>, vector<1x1x8x8xf32>
    %10 = vector.shape_cast %9 : vector<1x1x8x8xf32> to vector<8x8xf32>
    %11 = vector.shape_cast %8 : vector<8x8xf32> to vector<1x1x8x8xf32>
    tpu.vector_store %arg10[%c0_8, %c0_9, %c0_10, %c0_11], %11 {strides = array<i32>} : memref<1x1x8x8xf32, #tpu.memory_space<vmem>>, vector<1x1x8x8xf32>,
    %c0_12 = arith.constant 0 : index
    %c0_13 = arith.constant 0 : index
    %c0_14 = arith.constant 0 : index
    %12 = vector.load %arg6[%c0_12, %c0_13, %c0_14] : memref<1x32x8xf32, #tpu.memory_space<vmem>>, vector<1x32x8xf32>
    %13 = vector.shape_cast %12 : vector<1x32x8xf32> to vector<32x8xf32>
    %cst_15 = arith.constant dense<0.000000e+00> : vector<8x8xf32>
    %14 = tpu.matmul %1, %13, %cst_15 {dimension_numbers = #tpu.dot_dimension_numbers<[1], [0], [0], [1], [0, 0, 1, 1], [], []>} : vector<8x32xf32>, vector<32x8xf32>, vector<8x8xf32> -> vector<8x8xf32>
    %c0_16 = arith.constant 0 : index
    %c0_17 = arith.constant 0 : index
    %c0_18 = arith.constant 0 : index
    %15 = vector.load %arg7[%c0_16, %c0_17, %c0_18] : memref<1x1x8xf32, #tpu.memory_space<vmem>>, vector<1x1x8xf32>
    %16 = vector.shape_cast %15 : vector<1x1x8xf32> to vector<1x8xf32>
    %17 = vector.broadcast %16 : vector<1x8xf32> to vector<8x8xf32>
    %18 = arith.addf %14, %17 : vector<8x8xf32>
    %c0_19 = arith.constant 0 : index
    %c0_20 = arith.constant 0 : index
    %c0_21 = arith.constant 0 : index
    %c0_22 = arith.constant 0 : index
    %19 = vector.load %arg11[%c0_19, %c0_20, %c0_21, %c0_22] : memref<1x1x8x8xf32, #tpu.memory_space<vmem>>, vector<1x1x8x8xf32>
    %20 = vector.shape_cast %19 : vector<1x1x8x8xf32> to vector<8x8xf32>
    %21 = vector.shape_cast %18 : vector<8x8xf32> to vector<1x1x8x8xf32>
    tpu.vector_store %arg11[%c0_19, %c0_20, %c0_21, %c0_22], %21 {strides = array<i32>} : memref<1x1x8x8xf32, #tpu.memory_space<vmem>>, vector<1x1x8x8xf32>,
    %c0_23 = arith.constant 0 : index
    %c0_24 = arith.constant 0 : index
    %c0_25 = arith.constant 0 : index
    %22 = vector.load %arg8[%c0_23, %c0_24, %c0_25] : memref<1x32x8xf32, #tpu.memory_space<vmem>>, vector<1x32x8xf32>
    %23 = vector.shape_cast %22 : vector<1x32x8xf32> to vector<32x8xf32>
    %cst_26 = arith.constant dense<0.000000e+00> : vector<8x8xf32>
    %24 = tpu.matmul %1, %23, %cst_26 {dimension_numbers = #tpu.dot_dimension_numbers<[1], [0], [0], [1], [0, 0, 1, 1], [], []>} : vector<8x32xf32>, vector<32x8xf32>, vector<8x8xf32> -> vector<8x8xf32>
    %c0_27 = arith.constant 0 : index
    %c0_28 = arith.constant 0 : index
    %c0_29 = arith.constant 0 : index
    %25 = vector.load %arg9[%c0_27, %c0_28, %c0_29] : memref<1x1x8xf32, #tpu.memory_space<vmem>>, vector<1x1x8xf32>
    %26 = vector.shape_cast %25 : vector<1x1x8xf32> to vector<1x8xf32>
    %27 = vector.broadcast %26 : vector<1x8xf32> to vector<8x8xf32>
    %28 = arith.addf %24, %27 : vector<8x8xf32>
    %c0_30 = arith.constant 0 : index
    %c0_31 = arith.constant 0 : index
    %c0_32 = arith.constant 0 : index
    %c0_33 = arith.constant 0 : index
    %29 = vector.load %arg12[%c0_30, %c0_31, %c0_32, %c0_33] : memref<1x1x8x8xf32, #tpu.memory_space<vmem>>, vector<1x1x8x8xf32>
    %30 = vector.shape_cast %29 : vector<1x1x8x8xf32> to vector<8x8xf32>
    %31 = vector.shape_cast %28 : vector<8x8xf32> to vector<1x1x8x8xf32>
    tpu.vector_store %arg12[%c0_30, %c0_31, %c0_32, %c0_33], %31 {strides = array<i32>} : memref<1x1x8x8xf32, #tpu.memory_space<vmem>>, vector<1x1x8x8xf32>,
    return
  }
  func.func @transform_0(%arg0: i32, %arg1: i32, %arg2: i32) -> (i32, i32, i32) {
    %c0_i32 = arith.constant 0 : i32
    %c0_i32_0 = arith.constant 0 : i32
    return %arg0, %arg2, %c0_i32 : i32, i32, i32
  }
  func.func @transform_1(%arg0: i32, %arg1: i32, %arg2: i32) -> (i32, i32, i32) {
    %c0_i32 = arith.constant 0 : i32
    %c0_i32_0 = arith.constant 0 : i32
    %c0_i32_1 = arith.constant 0 : i32
    return %arg1, %c0_i32, %c0_i32_0 : i32, i32, i32
  }
  func.func @transform_2(%arg0: i32, %arg1: i32, %arg2: i32) -> (i32, i32, i32) {
    %c0_i32 = arith.constant 0 : i32
    %c0_i32_0 = arith.constant 0 : i32
    %c0_i32_1 = arith.constant 0 : i32
    return %arg1, %c0_i32, %c0_i32_0 : i32, i32, i32
  }
  func.func @transform_3(%arg0: i32, %arg1: i32, %arg2: i32) -> (i32, i32, i32) {
    %c0_i32 = arith.constant 0 : i32
    %c0_i32_0 = arith.constant 0 : i32
    %c0_i32_1 = arith.constant 0 : i32
    return %arg1, %c0_i32, %c0_i32_0 : i32, i32, i32
  }
  func.func @transform_4(%arg0: i32, %arg1: i32, %arg2: i32) -> (i32, i32, i32) {
    %c0_i32 = arith.constant 0 : i32
    %c0_i32_0 = arith.constant 0 : i32
    %c0_i32_1 = arith.constant 0 : i32
    return %arg1, %c0_i32, %c0_i32_0 : i32, i32, i32
  }
  func.func @transform_5(%arg0: i32, %arg1: i32, %arg2: i32) -> (i32, i32, i32) {
    %c0_i32 = arith.constant 0 : i32
    %c0_i32_0 = arith.constant 0 : i32
    %c0_i32_1 = arith.constant 0 : i32
    return %arg1, %c0_i32, %c0_i32_0 : i32, i32, i32
  }
  func.func @transform_6(%arg0: i32, %arg1: i32, %arg2: i32) -> (i32, i32, i32) {
    %c0_i32 = arith.constant 0 : i32
    %c0_i32_0 = arith.constant 0 : i32
    %c0_i32_1 = arith.constant 0 : i32
    return %arg1, %c0_i32, %c0_i32_0 : i32, i32, i32
  }
  func.func @transform_7(%arg0: i32, %arg1: i32, %arg2: i32) -> (i32, i32, i32, i32) {
    %c0_i32 = arith.constant 0 : i32
    %c0_i32_0 = arith.constant 0 : i32
    return %arg0, %arg1, %arg2, %c0_i32 : i32, i32, i32, i32
  }
  func.func @transform_8(%arg0: i32, %arg1: i32, %arg2: i32) -> (i32, i32, i32, i32) {
    %c0_i32 = arith.constant 0 : i32
    %c0_i32_0 = arith.constant 0 : i32
    return %arg0, %arg1, %arg2, %c0_i32 : i32, i32, i32, i32
  }
  func.func @transform_9(%arg0: i32, %arg1: i32, %arg2: i32) -> (i32, i32, i32, i32) {
    %c0_i32 = arith.constant 0 : i32
    %c0_i32_0 = arith.constant 0 : i32
    return %arg0, %arg1, %arg2, %c0_i32 : i32, i32, i32, i32
  }
}

</mosaic_0001>

<llo_original>
// kernel: tpu_custom_call.1
$region0: #{tpu_custom_call.1}
  #allocation0 [shape = 'u32[]', space=smem, size = 0x4, offset = 0x4, fixed_abs, tag = 'smem constant byte address 0x4 - core index']
  #allocation1 [shape = 'u32[72,128]{1,0:T(1,128)}', space=vmem, size = 0x9000, scoped, tag = 'internal scratch']
  %s0 = inlined_call_operand.vmem [shape: f32[2,16,32], index: 0, kind: input, shape index: {}]
  %s1 = inlined_call_operand.vmem [shape: f32[4,32,8], index: 1, kind: input, shape index: {}]
  %s2 = inlined_call_operand.vmem [shape: f32[4,1,8], index: 2, kind: input, shape index: {}]
  %s3 = inlined_call_operand.vmem [shape: f32[4,32,8], index: 3, kind: input, shape index: {}]
  %s4 = inlined_call_operand.vmem [shape: f32[4,1,8], index: 4, kind: input, shape index: {}]
  %s5 = inlined_call_operand.vmem [shape: f32[4,32,8], index: 5, kind: input, shape index: {}]
  %s6 = inlined_call_operand.vmem [shape: f32[4,1,8], index: 6, kind: input, shape index: {}]
  %s7 = inlined_call_operand.vmem [shape: f32[2,4,16,8], index: 7, kind: output, shape index: {0}]
  %s8 = inlined_call_operand.vmem [shape: f32[2,4,16,8], index: 8, kind: output, shape index: {1}]
  %s9 = inlined_call_operand.vmem [shape: f32[2,4,16,8], index: 9, kind: output, shape index: {2}]
  %10 = xla_tuple %s7, %s8, %s9
  %s11 = sld [smem:[#allocation0]]
  $region77: #{tpu_custom_call.1} parent=0
    _
  %s13 = ssub.s32 1, %s11
  %s14 = scalar_select 0, %s13, %s11
  loop: start=0, step=1, limit=18
  $region2: #{tpu_custom_call.1} parent=0 // loop_pre_header
    _
  $region3: #{tpu_custom_call.1} parent=0 // loop_header
    %s16 = sphi 0, %s20
    %p17 = scmp.ge.s32.totalorder %s16, 18
    %s23 = sphi 0, %s42
    %s24 = sphi 0, %s38
    %s25 = sphi 0, %s34
    %s26 = sphi 0, %s23
    %s27 = sphi 0, %s24
    %s28 = sphi 0, %s25
    %s29 = sphi 0, %s26
    %s30 = sphi 0, %s27
    %s31 = sphi 0, %s28
    %s47 = sphi 0, %s49
    %s50 = sphi 0, %s47
    %s51 = sphi 0, %s50
    %s67 = sphi 0, %s51
    %s73 = sphi 0, %s75
    %s76 = sphi 0, %s73
    %s77 = sphi 0, %s76
    %s93 = sphi 0, %s77
    %s99 = sphi 0, %s101
    %s102 = sphi 0, %s99
    %s103 = sphi 0, %s102
    %s119 = sphi 0, %s103
    %s125 = sphi 0, %s127
    %s128 = sphi 0, %s125
    %s129 = sphi 0, %s128
    %s145 = sphi 0, %s129
    %s151 = sphi 0, %s153
    %s154 = sphi 0, %s151
    %s155 = sphi 0, %s154
    %s171 = sphi 0, %s155
    %s177 = sphi 0, %s179
    %s180 = sphi 0, %s177
    %s181 = sphi 0, %s180
    %s197 = sphi 0, %s181
    %s203 = sphi 0, %s205
    %s206 = sphi 0, %s203
    %s207 = sphi 0, %s206
    %s223 = sphi 0, %s207
    %s233 = sphi 0, %s235
    %s236 = sphi 0, %s233
    %s237 = sphi 0, %s236
    %s253 = sphi 0, %s237
    %s263 = sphi 0, %s265
    %s266 = sphi 0, %s263
    %s267 = sphi 0, %s266
    %s283 = sphi 0, %s267
    %s293 = sphi 0, %s295
    %s296 = sphi 0, %s293
    %s297 = sphi 0, %s296
    %s313 = sphi 0, %s297
  $region4: #{tpu_custom_call.1} parent=0 // loop_header_branch
    %19 = sbr.rel (%p17) target = $region8
  $region5: #{tpu_custom_call.1} parent=0 // loop_body
    %s21 = ssub.s32 %s16, 1
    %s22 = ssub.s32 %s16, 2
    %s32 = sadd.s32 1, %s25
    %p33 = scmp.ge.s32.totalorder %s32, 2
    %s34 = scalar_select %p33, 0, %s32
    %s35 = sadd.s32 1, %s24
    %s36 = scalar_select %p33, %s35, %s24
    %p37 = scmp.ge.s32.totalorder %s36, 4
    %s38 = scalar_select %p37, 0, %s36
    %s39 = sadd.s32 1, %s23
    %s40 = scalar_select %p37, %s39, %s23
    %p41 = scmp.ge.s32.totalorder %s40, 2
    %s42 = scalar_select %p41, 0, %s40
    %s43 = ssub.s32 %s23, %s42
    %s44 = ssub.s32 %s25, %s34
    %s45 = sor.u32 %s43, %s44
    %p46 = scmp.eq.s32.totalorder %s45, 0
    %s48 = sadd.s32 %s47, 1
    %s49 = scalar_select %p46, %s47, %s48
    %p52 = pneg %p46
    %p53 = scmp.eq.s32.totalorder %s16, 15
    %p54 = por %p52, %p53
    %p55 = scmp.ne.s32.totalorder %s47, %s50
    %p56 = scmp.eq.s32.totalorder %s16, 0
    %p57 = por %p55, %p56
    %p58 = scmp.ne.s32.totalorder %s47, %s50
    %p59 = scmp.eq.s32.totalorder %s21, 15
    %p60 = por %p58, %p59
    %p61 = scmp.ne.s32.totalorder %s50, %s51
    %p62 = scmp.eq.s32.totalorder %s21, 0
    %p63 = por %p61, %p62
    %p64 = scmp.ne.s32.totalorder %s50, %s51
    %p65 = scmp.eq.s32.totalorder %s22, 15
    %p66 = por %p64, %p65
    %p68 = scmp.ne.s32.totalorder %s51, %s67
    %p69 = scmp.eq.s32.totalorder %s22, 0
    %p70 = por %p68, %p69
    %s71 = ssub.s32 %s24, %s38
    %p72 = scmp.eq.s32.totalorder %s71, 0
    %s74 = sadd.s32 %s73, 1
    %s75 = scalar_select %p72, %s73, %s74
    %p78 = pneg %p72
    %p79 = scmp.eq.s32.totalorder %s16, 15
    %p80 = por %p78, %p79
    %p81 = scmp.ne.s32.totalorder %s73, %s76
    %p82 = scmp.eq.s32.totalorder %s16, 0
    %p83 = por %p81, %p82
    %p84 = scmp.ne.s32.totalorder %s73, %s76
    %p85 = scmp.eq.s32.totalorder %s21, 15
    %p86 = por %p84, %p85
    %p87 = scmp.ne.s32.totalorder %s76, %s77
    %p88 = scmp.eq.s32.totalorder %s21, 0
    %p89 = por %p87, %p88
    %p90 = scmp.ne.s32.totalorder %s76, %s77
    %p91 = scmp.eq.s32.totalorder %s22, 15
    %p92 = por %p90, %p91
    %p94 = scmp.ne.s32.totalorder %s77, %s93
    %p95 = scmp.eq.s32.totalorder %s22, 0
    %p96 = por %p94, %p95
    %s97 = ssub.s32 %s24, %s38
    %p98 = scmp.eq.s32.totalorder %s97, 0
    %s100 = sadd.s32 %s99, 1
    %s101 = scalar_select %p98, %s99, %s100
    %p104 = pneg %p98
    %p105 = scmp.eq.s32.totalorder %s16, 15
    %p106 = por %p104, %p105
    %p107 = scmp.ne.s32.totalorder %s99, %s102
    %p108 = scmp.eq.s32.totalorder %s16, 0
    %p109 = por %p107, %p108
    %p110 = scmp.ne.s32.totalorder %s99, %s102
    %p111 = scmp.eq.s32.totalorder %s21, 15
    %p112 = por %p110, %p111
    %p113 = scmp.ne.s32.totalorder %s102, %s103
    %p114 = scmp.eq.s32.totalorder %s21, 0
    %p115 = por %p113, %p114
    %p116 = scmp.ne.s32.totalorder %s102, %s103
    %p117 = scmp.eq.s32.totalorder %s22, 15
    %p118 = por %p116, %p117
    %p120 = scmp.ne.s32.totalorder %s103, %s119
    %p121 = scmp.eq.s32.totalorder %s22, 0
    %p122 = por %p120, %p121
    %s123 = ssub.s32 %s24, %s38
    %p124 = scmp.eq.s32.totalorder %s123, 0
    %s126 = sadd.s32 %s125, 1
    %s127 = scalar_select %p124, %s125, %s126
    %p130 = pneg %p124
    %p131 = scmp.eq.s32.totalorder %s16, 15
    %p132 = por %p130, %p131
    %p133 = scmp.ne.s32.totalorder %s125, %s128
    %p134 = scmp.eq.s32.totalorder %s16, 0
    %p135 = por %p133, %p134
    %p136 = scmp.ne.s32.totalorder %s125, %s128
    %p137 = scmp.eq.s32.totalorder %s21, 15
    %p138 = por %p136, %p137
    %p139 = scmp.ne.s32.totalorder %s128, %s129
    %p140 = scmp.eq.s32.totalorder %s21, 0
    %p141 = por %p139, %p140
    %p142 = scmp.ne.s32.totalorder %s128, %s129
    %p143 = scmp.eq.s32.totalorder %s22, 15
    %p144 = por %p142, %p143
    %p146 = scmp.ne.s32.totalorder %s129, %s145
    %p147 = scmp.eq.s32.totalorder %s22, 0
    %p148 = por %p146, %p147
    %s149 = ssub.s32 %s24, %s38
    %p150 = scmp.eq.s32.totalorder %s149, 0
    %s152 = sadd.s32 %s151, 1
    %s153 = scalar_select %p150, %s151, %s152
    %p156 = pneg %p150
    %p157 = scmp.eq.s32.totalorder %s16, 15
    %p158 = por %p156, %p157
    %p159 = scmp.ne.s32.totalorder %s151, %s154
    %p160 = scmp.eq.s32.totalorder %s16, 0
    %p161 = por %p159, %p160
    %p162 = scmp.ne.s32.totalorder %s151, %s154
    %p163 = scmp.eq.s32.totalorder %s21, 15
    %p164 = por %p162, %p163
    %p165 = scmp.ne.s32.totalorder %s154, %s155
    %p166 = scmp.eq.s32.totalorder %s21, 0
    %p167 = por %p165, %p166
    %p168 = scmp.ne.s32.totalorder %s154, %s155
    %p169 = scmp.eq.s32.totalorder %s22, 15
    %p170 = por %p168, %p169
    %p172 = scmp.ne.s32.totalorder %s155, %s171
    %p173 = scmp.eq.s32.totalorder %s22, 0
    %p174 = por %p172, %p173
    %s175 = ssub.s32 %s24, %s38
    %p176 = scmp.eq.s32.totalorder %s175, 0
    %s178 = sadd.s32 %s177, 1
    %s179 = scalar_select %p176, %s177, %s178
    %p182 = pneg %p176
    %p183 = scmp.eq.s32.totalorder %s16, 15
    %p184 = por %p182, %p183
    %p185 = scmp.ne.s32.totalorder %s177, %s180
    %p186 = scmp.eq.s32.totalorder %s16, 0
    %p187 = por %p185, %p186
    %p188 = scmp.ne.s32.totalorder %s177, %s180
    %p189 = scmp.eq.s32.totalorder %s21, 15
    %p190 = por %p188, %p189
    %p191 = scmp.ne.s32.totalorder %s180, %s181
    %p192 = scmp.eq.s32.totalorder %s21, 0
    %p193 = por %p191, %p192
    %p194 = scmp.ne.s32.totalorder %s180, %s181
    %p195 = scmp.eq.s32.totalorder %s22, 15
    %p196 = por %p194, %p195
    %p198 = scmp.ne.s32.totalorder %s181, %s197
    %p199 = scmp.eq.s32.totalorder %s22, 0
    %p200 = por %p198, %p199
    %s201 = ssub.s32 %s24, %s38
    %p202 = scmp.eq.s32.totalorder %s201, 0
    %s204 = sadd.s32 %s203, 1
    %s205 = scalar_select %p202, %s203, %s204
    %p208 = pneg %p202
    %p209 = scmp.eq.s32.totalorder %s16, 15
    %p210 = por %p208, %p209
    %p211 = scmp.ne.s32.totalorder %s203, %s206
    %p212 = scmp.eq.s32.totalorder %s16, 0
    %p213 = por %p211, %p212
    %p214 = scmp.ne.s32.totalorder %s203, %s206
    %p215 = scmp.eq.s32.totalorder %s21, 15
    %p216 = por %p214, %p215
    %p217 = scmp.ne.s32.totalorder %s206, %s207
    %p218 = scmp.eq.s32.totalorder %s21, 0
    %p219 = por %p217, %p218
    %p220 = scmp.ne.s32.totalorder %s206, %s207
    %p221 = scmp.eq.s32.totalorder %s22, 15
    %p222 = por %p220, %p221
    %p224 = scmp.ne.s32.totalorder %s207, %s223
    %p225 = scmp.eq.s32.totalorder %s22, 0
    %p226 = por %p224, %p225
    %s227 = ssub.s32 %s23, %s42
    %s228 = ssub.s32 %s24, %s38
    %s229 = sor.u32 %s227, %s228
    %s230 = ssub.s32 %s25, %s34
    %s231 = sor.u32 %s229, %s230
    %p232 = scmp.eq.s32.totalorder %s231, 0
    %s234 = sadd.s32 %s233, 1
    %s235 = scalar_select %p232, %s233, %s234
    %p238 = pneg %p232
    %p239 = scmp.eq.s32.totalorder %s16, 15
    %p240 = por %p238, %p239
    %p241 = scmp.ne.s32.totalorder %s233, %s236
    %p242 = scmp.eq.s32.totalorder %s16, 0
    %p243 = por %p241, %p242
    %p244 = scmp.ne.s32.totalorder %s233, %s236
    %p245 = scmp.eq.s32.totalorder %s21, 15
    %p246 = por %p244, %p245
    %p247 = scmp.ne.s32.totalorder %s236, %s237
    %p248 = scmp.eq.s32.totalorder %s21, 0
    %p249 = por %p247, %p248
    %p250 = scmp.ne.s32.totalorder %s236, %s237
    %p251 = scmp.eq.s32.totalorder %s22, 15
    %p252 = por %p250, %p251
    %p254 = scmp.ne.s32.totalorder %s237, %s253
    %p255 = scmp.eq.s32.totalorder %s22, 0
    %p256 = por %p254, %p255
    %s257 = ssub.s32 %s23, %s42
    %s258 = ssub.s32 %s24, %s38
    %s259 = sor.u32 %s257, %s258
    %s260 = ssub.s32 %s25, %s34
    %s261 = sor.u32 %s259, %s260
    %p262 = scmp.eq.s32.totalorder %s261, 0
    %s264 = sadd.s32 %s263, 1
    %s265 = scalar_select %p262, %s263, %s264
    %p268 = pneg %p262
    %p269 = scmp.eq.s32.totalorder %s16, 15
    %p270 = por %p268, %p269
    %p271 = scmp.ne.s32.totalorder %s263, %s266
    %p272 = scmp.eq.s32.totalorder %s16, 0
    %p273 = por %p271, %p272
    %p274 = scmp.ne.s32.totalorder %s263, %s266
    %p275 = scmp.eq.s32.totalorder %s21, 15
    %p276 = por %p274, %p275
    %p277 = scmp.ne.s32.totalorder %s266, %s267
    %p278 = scmp.eq.s32.totalorder %s21, 0
    %p279 = por %p277, %p278
    %p280 = scmp.ne.s32.totalorder %s266, %s267
    %p281 = scmp.eq.s32.totalorder %s22, 15
    %p282 = por %p280, %p281
    %p284 = scmp.ne.s32.totalorder %s267, %s283
    %p285 = scmp.eq.s32.totalorder %s22, 0
    %p286 = por %p284, %p285
    %s287 = ssub.s32 %s23, %s42
    %s288 = ssub.s32 %s24, %s38
    %s289 = sor.u32 %s287, %s288
    %s290 = ssub.s32 %s25, %s34
    %s291 = sor.u32 %s289, %s290
    %p292 = scmp.eq.s32.totalorder %s291, 0
    %s294 = sadd.s32 %s293, 1
    %s295 = scalar_select %p292, %s293, %s294
    %p298 = pneg %p292
    %p299 = scmp.eq.s32.totalorder %s16, 15
    %p300 = por %p298, %p299
    %p301 = scmp.ne.s32.totalorder %s293, %s296
    %p302 = scmp.eq.s32.totalorder %s16, 0
    %p303 = por %p301, %p302
    %p304 = scmp.ne.s32.totalorder %s293, %s296
    %p305 = scmp.eq.s32.totalorder %s21, 15
    %p306 = por %p304, %p305
    %p307 = scmp.ne.s32.totalorder %s296, %s297
    %p308 = scmp.eq.s32.totalorder %s21, 0
    %p309 = por %p307, %p308
    %p310 = scmp.ne.s32.totalorder %s296, %s297
    %p311 = scmp.eq.s32.totalorder %s22, 15
    %p312 = por %p310, %p311
    %p314 = scmp.ne.s32.totalorder %s297, %s313
    %p315 = scmp.eq.s32.totalorder %s22, 0
    %p316 = por %p314, %p315
    %p317 = scmp.le.s32.totalorder 1, %s16
    %p318 = scmp.lt.s32.totalorder %s16, 17
    %p319 = pnand %p317, %p318
    %p320 = pneg %p319
    // Predicated region
    $region9: #{tpu_custom_call.1} parent=5 // pred_check
      _
    $region10: #{tpu_custom_call.1} parent=5 // pred_check_branch
      %322 = sbr.rel (%p319) target = $region12
    $region11: #{tpu_custom_call.1} parent=5 // pred_region
      %s323 = ssub.s32 %s16, 1
    $region12: #{tpu_custom_call.1} parent=5 // pred_fallthru
      _
    %p324 = scmp.lt.s32.totalorder %s16, 16
    // Predicated region
    $region13: #{tpu_custom_call.1} parent=5 // pred_check
      %p325 = pneg %p324
    $region14: #{tpu_custom_call.1} parent=5 // pred_check_branch
      %327 = sbr.rel (%p325) target = $region16
    $region15: #{tpu_custom_call.1} parent=5 // pred_region
      // Predicated region
      $region17: #{tpu_custom_call.1} parent=15 // pred_check
        %p328 = pneg %p57
      $region18: #{tpu_custom_call.1} parent=15 // pred_check_branch
        %330 = sbr.rel (%p328) target = $region20
      $region19: #{tpu_custom_call.1} parent=15 // pred_region
        %p331 = scmp.lt.s32.totalorder %s23, 1
        %s332 = scalar_select %p331, %s23, 1
        %p333 = scmp.lt.s32.totalorder %s25, 1
        %s334 = scalar_select %p333, %s25, 1
        %s335 = smul.addr %s332, 2
        %s336 = sadd.s32 %s334, %s335
        %s337 = smul.addr %s336, 8
        %s338 = scalar_lea.vmem %s0, %s337
      $region20: #{tpu_custom_call.1} parent=15 // pred_fallthru
        _
      // Predicated region
      $region21: #{tpu_custom_call.1} parent=15 // pred_check
        %p339 = pneg %p83
      $region22: #{tpu_custom_call.1} parent=15 // pred_check_branch
        %341 = sbr.rel (%p339) target = $region24
      $region23: #{tpu_custom_call.1} parent=15 // pred_region
        %p342 = scmp.lt.s32.totalorder %s24, 3
        %s343 = scalar_select %p342, %s24, 3
        %s344 = smul.addr %s343, 4
        %s345 = smul.addr %s344, 8
        %s346 = scalar_lea.vmem %s1, %s345
      $region24: #{tpu_custom_call.1} parent=15 // pred_fallthru
        _
      // Predicated region
      $region25: #{tpu_custom_call.1} parent=15 // pred_check
        %p347 = pneg %p109
      $region26: #{tpu_custom_call.1} parent=15 // pred_check_branch
        %349 = sbr.rel (%p347) target = $region28
      $region27: #{tpu_custom_call.1} parent=15 // pred_region
        %p350 = scmp.lt.s32.totalorder %s24, 3
        %s351 = scalar_select %p350, %s24, 3
        %s352 = scalar_lea.vmem %s2, %s351
      $region28: #{tpu_custom_call.1} parent=15 // pred_fallthru
        _
      // Predicated region
      $region29: #{tpu_custom_call.1} parent=15 // pred_check
        %p353 = pneg %p135
      $region30: #{tpu_custom_call.1} parent=15 // pred_check_branch
        %355 = sbr.rel (%p353) target = $region32
      $region31: #{tpu_custom_call.1} parent=15 // pred_region
        %p356 = scmp.lt.s32.totalorder %s24, 3
        %s357 = scalar_select %p356, %s24, 3
        %s358 = smul.addr %s357, 4
        %s359 = smul.addr %s358, 8
        %s360 = scalar_lea.vmem %s3, %s359
      $region32: #{tpu_custom_call.1} parent=15 // pred_fallthru
        _
      // Predicated region
      $region33: #{tpu_custom_call.1} parent=15 // pred_check
        %p361 = pneg %p161
      $region34: #{tpu_custom_call.1} parent=15 // pred_check_branch
        %363 = sbr.rel (%p361) target = $region36
      $region35: #{tpu_custom_call.1} parent=15 // pred_region
        %p364 = scmp.lt.s32.totalorder %s24, 3
        %s365 = scalar_select %p364, %s24, 3
        %s366 = scalar_lea.vmem %s4, %s365
      $region36: #{tpu_custom_call.1} parent=15 // pred_fallthru
        _
      // Predicated region
      $region37: #{tpu_custom_call.1} parent=15 // pred_check
        %p367 = pneg %p187
      $region38: #{tpu_custom_call.1} parent=15 // pred_check_branch
        %369 = sbr.rel (%p367) target = $region40
      $region39: #{tpu_custom_call.1} parent=15 // pred_region
        %p370 = scmp.lt.s32.totalorder %s24, 3
        %s371 = scalar_select %p370, %s24, 3
        %s372 = smul.addr %s371, 4
        %s373 = smul.addr %s372, 8
        %s374 = scalar_lea.vmem %s5, %s373
      $region40: #{tpu_custom_call.1} parent=15 // pred_fallthru
        _
      // Predicated region
      $region41: #{tpu_custom_call.1} parent=15 // pred_check
        %p375 = pneg %p213
      $region42: #{tpu_custom_call.1} parent=15 // pred_check_branch
        %377 = sbr.rel (%p375) target = $region44
      $region43: #{tpu_custom_call.1} parent=15 // pred_region
        %p378 = scmp.lt.s32.totalorder %s24, 3
        %s379 = scalar_select %p378, %s24, 3
        %s380 = scalar_lea.vmem %s6, %s379
      $region44: #{tpu_custom_call.1} parent=15 // pred_fallthru
        _
    $region16: #{tpu_custom_call.1} parent=5 // pred_fallthru
      _
    %p381 = scmp.le.s32.totalorder 1, %s16
    %p382 = scmp.lt.s32.totalorder %s16, 17
    %p383 = pnand %p381, %p382
    %p384 = pneg %p383
    // Predicated region
    $region45: #{tpu_custom_call.1} parent=5 // pred_check
      _
    $region46: #{tpu_custom_call.1} parent=5 // pred_check_branch
      %386 = sbr.rel (%p383) target = $region48
    $region47: #{tpu_custom_call.1} parent=5 // pred_region
      %s387 = ssub.s32 %s16, 1
      %p388 = scmp.lt.s32.totalorder %s26, 1
      %s389 = scalar_select %p388, %s26, 1
      %p390 = scmp.lt.s32.totalorder %s28, 1
      %s391 = scalar_select %p390, %s28, 1
      %s392 = smul.addr %s389, 2
      %s393 = sadd.s32 %s391, %s392
      %s394 = smul.addr %s393, 8
      %s395 = scalar_lea.vmem %s0, %s394
      %p396 = pneg %p63
      %p397 = pneg %p60
      %p398 = scmp.lt.s32.totalorder %s27, 3
      %s399 = scalar_select %p398, %s27, 3
      %s400 = smul.addr %s399, 4
      %s401 = smul.addr %s400, 8
      %s402 = scalar_lea.vmem %s1, %s401
      %p403 = pneg %p89
      %p404 = pneg %p86
      %p405 = scmp.lt.s32.totalorder %s27, 3
      %s406 = scalar_select %p405, %s27, 3
      %s407 = scalar_lea.vmem %s2, %s406
      %p408 = pneg %p115
      %p409 = pneg %p112
      %p410 = scmp.lt.s32.totalorder %s27, 3
      %s411 = scalar_select %p410, %s27, 3
      %s412 = smul.addr %s411, 4
      %s413 = smul.addr %s412, 8
      %s414 = scalar_lea.vmem %s3, %s413
      %p415 = pneg %p141
      %p416 = pneg %p138
      %p417 = scmp.lt.s32.totalorder %s27, 3
      %s418 = scalar_select %p417, %s27, 3
      %s419 = scalar_lea.vmem %s4, %s418
      %p420 = pneg %p167
      %p421 = pneg %p164
      %p422 = scmp.lt.s32.totalorder %s27, 3
      %s423 = scalar_select %p422, %s27, 3
      %s424 = smul.addr %s423, 4
      %s425 = smul.addr %s424, 8
      %s426 = scalar_lea.vmem %s5, %s425
      %p427 = pneg %p193
      %p428 = pneg %p190
      %p429 = scmp.lt.s32.totalorder %s27, 3
      %s430 = scalar_select %p429, %s27, 3
      %s431 = scalar_lea.vmem %s6, %s430
      %p432 = pneg %p219
      %p433 = pneg %p216
      %p434 = pneg %p249
      %p435 = pneg %p246
      %p436 = scmp.lt.s32.totalorder %s26, 1
      %s437 = scalar_select %p436, %s26, 1
      %p438 = scmp.lt.s32.totalorder %s27, 3
      %s439 = scalar_select %p438, %s27, 3
      %p440 = scmp.lt.s32.totalorder %s28, 1
      %s441 = scalar_select %p440, %s28, 1
      %s442 = smul.addr %s439, 2
      %s443 = sadd.s32 %s441, %s442
      %s444 = smul.addr %s437, 8
      %s445 = sadd.s32 %s443, %s444
      %s446 = smul.addr %s445, 8
      %s447 = scalar_lea.vmem %s7, %s446
      %p448 = pneg %p279
      %p449 = pneg %p276
      %p450 = scmp.lt.s32.totalorder %s26, 1
      %s451 = scalar_select %p450, %s26, 1
      %p452 = scmp.lt.s32.totalorder %s27, 3
      %s453 = scalar_select %p452, %s27, 3
      %p454 = scmp.lt.s32.totalorder %s28, 1
      %s455 = scalar_select %p454, %s28, 1
      %s456 = smul.addr %s453, 2
      %s457 = sadd.s32 %s455, %s456
      %s458 = smul.addr %s451, 8
      %s459 = sadd.s32 %s457, %s458
      %s460 = smul.addr %s459, 8
      %s461 = scalar_lea.vmem %s8, %s460
      %p462 = pneg %p309
      %p463 = pneg %p306
      %p464 = scmp.lt.s32.totalorder %s26, 1
      %s465 = scalar_select %p464, %s26, 1
      %p466 = scmp.lt.s32.totalorder %s27, 3
      %s467 = scalar_select %p466, %s27, 3
      %p468 = scmp.lt.s32.totalorder %s28, 1
      %s469 = scalar_select %p468, %s28, 1
      %s470 = smul.addr %s467, 2
      %s471 = sadd.s32 %s469, %s470
      %s472 = smul.addr %s465, 8
      %s473 = sadd.s32 %s471, %s472
      %s474 = smul.addr %s473, 8
      %s475 = scalar_lea.vmem %s9, %s474
      %p476 = scmp.lt.s32.totalorder %s26, 1
      %s477 = scalar_select %p476, %s26, 1
      %p478 = scmp.lt.s32.totalorder %s28, 1
      %s479 = scalar_select %p478, %s28, 1
      %s480 = smul.addr %s477, 2
      %s481 = sadd.s32 %s479, %s480
      %s482 = smul.addr %s481, 8
      %s483 = scalar_lea.vmem %s0, %s482
      %p484 = scmp.lt.s32.totalorder %s27, 3
      %s485 = scalar_select %p484, %s27, 3
      %s486 = smul.addr %s485, 4
      %s487 = smul.addr %s486, 8
      %s488 = scalar_lea.vmem %s1, %s487
      %p489 = scmp.lt.s32.totalorder %s27, 3
      %s490 = scalar_select %p489, %s27, 3
      %s491 = scalar_lea.vmem %s2, %s490
      %p492 = scmp.lt.s32.totalorder %s27, 3
      %s493 = scalar_select %p492, %s27, 3
      %s494 = smul.addr %s493, 4
      %s495 = smul.addr %s494, 8
      %s496 = scalar_lea.vmem %s3, %s495
      %p497 = scmp.lt.s32.totalorder %s27, 3
      %s498 = scalar_select %p497, %s27, 3
      %s499 = scalar_lea.vmem %s4, %s498
      %p500 = scmp.lt.s32.totalorder %s27, 3
      %s501 = scalar_select %p500, %s27, 3
      %s502 = smul.addr %s501, 4
      %s503 = smul.addr %s502, 8
      %s504 = scalar_lea.vmem %s5, %s503
      %p505 = scmp.lt.s32.totalorder %s27, 3
      %s506 = scalar_select %p505, %s27, 3
      %s507 = scalar_lea.vmem %s6, %s506
      %p508 = scmp.lt.s32.totalorder %s26, 1
      %s509 = scalar_select %p508, %s26, 1
      %p510 = scmp.lt.s32.totalorder %s27, 3
      %s511 = scalar_select %p510, %s27, 3
      %p512 = scmp.lt.s32.totalorder %s28, 1
      %s513 = scalar_select %p512, %s28, 1
      %s514 = smul.addr %s511, 2
      %s515 = sadd.s32 %s513, %s514
      %s516 = smul.addr %s509, 8
      %s517 = sadd.s32 %s515, %s516
      %s518 = smul.addr %s517, 8
      %s519 = scalar_lea.vmem %s7, %s518
      %p520 = scmp.lt.s32.totalorder %s26, 1
      %s521 = scalar_select %p520, %s26, 1
      %p522 = scmp.lt.s32.totalorder %s27, 3
      %s523 = scalar_select %p522, %s27, 3
      %p524 = scmp.lt.s32.totalorder %s28, 1
      %s525 = scalar_select %p524, %s28, 1
      %s526 = smul.addr %s523, 2
      %s527 = sadd.s32 %s525, %s526
      %s528 = smul.addr %s521, 8
      %s529 = sadd.s32 %s527, %s528
      %s530 = smul.addr %s529, 8
      %s531 = scalar_lea.vmem %s8, %s530
      %p532 = scmp.lt.s32.totalorder %s26, 1
      %s533 = scalar_select %p532, %s26, 1
      %p534 = scmp.lt.s32.totalorder %s27, 3
      %s535 = scalar_select %p534, %s27, 3
      %p536 = scmp.lt.s32.totalorder %s28, 1
      %s537 = scalar_select %p536, %s28, 1
      %s538 = smul.addr %s535, 2
      %s539 = sadd.s32 %s537, %s538
      %s540 = smul.addr %s533, 8
      %s541 = sadd.s32 %s539, %s540
      %s542 = smul.addr %s541, 8
      %s543 = scalar_lea.vmem %s9, %s542
      %v544 = vld [vmem:[%s483] sm:$0xff]
      %v545 = vld [vmem:[%s488] sm:$0xff]
      %v546 = vld [vmem:[%s488 + $0x8] sm:$0xff]
      %v547 = vld [vmem:[%s488 + $0x10] sm:$0xff]
      %v548 = vld [vmem:[%s488 + $0x18] sm:$0xff]
      %v549 = vld [vmem:[%s491] sm:$0x1]
      %v551 = vperm.slane %v549, 0
      %vm553 = vcmask 261120
      %v555 = vsel %vm553, %v544, 0
      %557 = vmatpush.msra.mxu0 0.0
      %558 = vmatpush.msra.mxu0 0.0
      %559 = vmatpush.msra.mxu0 0.0
      %560 = vmatpush.msra.mxu0 0.0
      %561 = vmatpush.msra.mxu0 0.0
      %562 = vmatpush.msra.mxu0 0.0
      %563 = vmatpush.msra.mxu0 0.0
      %564 = vmatpush.msra.mxu0 0.0
      %565 = vmatpush.msra.mxu0 0.0
      %566 = vmatpush.msra.mxu0 0.0
      %567 = vmatpush.msra.mxu0 0.0
      %568 = vmatpush.msra.mxu0 0.0
      %569 = vmatpush.msra.mxu0 %v548
      %570 = vmatpush.msra.mxu0 %v547
      %571 = vmatpush.msra.mxu0 %v546
      %572 = vmatpush.msra.mxu0 %v545
      %573 = vmatmul.f32.gmra.mxu0 %v555
      %v574 = vpop.f32.mrf.mxu0
      %v575 = vadd.f32 %v551, %v574
      %576 = vdwg.mxu0
      %vm577 = vcmask 64512
      %578 = vst.msk [vmem:[%s519] sm:$0xff] %vm577, %v575
      %v579 = vld [vmem:[%s496] sm:$0xff]
      %v580 = vld [vmem:[%s496 + $0x8] sm:$0xff]
      %v581 = vld [vmem:[%s496 + $0x10] sm:$0xff]
      %v582 = vld [vmem:[%s496 + $0x18] sm:$0xff]
      %v583 = vld [vmem:[%s499] sm:$0x1]
      %v585 = vperm.slane %v583, 0
      %587 = vmatpush.msra.mxu0 0.0
      %588 = vmatpush.msra.mxu0 0.0
      %589 = vmatpush.msra.mxu0 0.0
      %590 = vmatpush.msra.mxu0 0.0
      %591 = vmatpush.msra.mxu0 0.0
      %592 = vmatpush.msra.mxu0 0.0
      %593 = vmatpush.msra.mxu0 0.0
      %594 = vmatpush.msra.mxu0 0.0
      %595 = vmatpush.msra.mxu0 0.0
      %596 = vmatpush.msra.mxu0 0.0
      %597 = vmatpush.msra.mxu0 0.0
      %598 = vmatpush.msra.mxu0 0.0
      %599 = vmatpush.msra.mxu0 %v582
      %600 = vmatpush.msra.mxu0 %v581
      %601 = vmatpush.msra.mxu0 %v580
      %602 = vmatpush.msra.mxu0 %v579
      %603 = vmatmul.f32.gmra.mxu0 %v555
      %v604 = vpop.f32.mrf.mxu0
      %v605 = vadd.f32 %v585, %v604
      %606 = vdwg.mxu0
      %607 = vst.msk [vmem:[%s531] sm:$0xff] %vm577, %v605
      %v608 = vld [vmem:[%s504] sm:$0xff]
      %v609 = vld [vmem:[%s504 + $0x8] sm:$0xff]
      %v610 = vld [vmem:[%s504 + $0x10] sm:$0xff]
      %v611 = vld [vmem:[%s504 + $0x18] sm:$0xff]
      %v612 = vld [vmem:[%s507] sm:$0x1]
      %v614 = vperm.slane %v612, 0
      %616 = vmatpush.msra.mxu0 0.0
      %617 = vmatpush.msra.mxu0 0.0
      %618 = vmatpush.msra.mxu0 0.0
      %619 = vmatpush.msra.mxu0 0.0
      %620 = vmatpush.msra.mxu0 0.0
      %621 = vmatpush.msra.mxu0 0.0
      %622 = vmatpush.msra.mxu0 0.0
      %623 = vmatpush.msra.mxu0 0.0
      %624 = vmatpush.msra.mxu0 0.0
      %625 = vmatpush.msra.mxu0 0.0
      %626 = vmatpush.msra.mxu0 0.0
      %627 = vmatpush.msra.mxu0 0.0
      %628 = vmatpush.msra.mxu0 %v611
      %629 = vmatpush.msra.mxu0 %v610
      %630 = vmatpush.msra.mxu0 %v609
      %631 = vmatpush.msra.mxu0 %v608
      %632 = vmatmul.f32.gmra.mxu0 %v555
      %v633 = vpop.f32.mrf.mxu0
      %v634 = vadd.f32 %v614, %v633
      %635 = vdwg.mxu0
      %636 = vst.msk [vmem:[%s543] sm:$0xff] %vm577, %v634
      %p637 = scmp.lt.s32.totalorder %s26, 1
      %s638 = scalar_select %p637, %s26, 1
      %p639 = scmp.lt.s32.totalorder %s27, 3
      %s640 = scalar_select %p639, %s27, 3
      %p641 = scmp.lt.s32.totalorder %s28, 1
      %s642 = scalar_select %p641, %s28, 1
      %s643 = smul.addr %s640, 2
      %s644 = sadd.s32 %s642, %s643
      %s645 = smul.addr %s638, 8
      %s646 = sadd.s32 %s644, %s645
      %s647 = smul.addr %s646, 8
      %s648 = scalar_lea.vmem %s7, %s647
      %p649 = scmp.lt.s32.totalorder %s26, 1
      %s650 = scalar_select %p649, %s26, 1
      %p651 = scmp.lt.s32.totalorder %s27, 3
      %s652 = scalar_select %p651, %s27, 3
      %p653 = scmp.lt.s32.totalorder %s28, 1
      %s654 = scalar_select %p653, %s28, 1
      %s655 = smul.addr %s652, 2
      %s656 = sadd.s32 %s654, %s655
      %s657 = smul.addr %s650, 8
      %s658 = sadd.s32 %s656, %s657
      %s659 = smul.addr %s658, 8
      %s660 = scalar_lea.vmem %s8, %s659
      %p661 = scmp.lt.s32.totalorder %s26, 1
      %s662 = scalar_select %p661, %s26, 1
      %p663 = scmp.lt.s32.totalorder %s27, 3
      %s664 = scalar_select %p663, %s27, 3
      %p665 = scmp.lt.s32.totalorder %s28, 1
      %s666 = scalar_select %p665, %s28, 1
      %s667 = smul.addr %s664, 2
      %s668 = sadd.s32 %s666, %s667
      %s669 = smul.addr %s662, 8
      %s670 = sadd.s32 %s668, %s669
      %s671 = smul.addr %s670, 8
      %s672 = scalar_lea.vmem %s9, %s671
      // Predicated region
      $region49: #{tpu_custom_call.1} parent=47 // pred_check
        %p673 = pneg %p246
      $region50: #{tpu_custom_call.1} parent=47 // pred_check_branch
        %675 = sbr.rel (%p673) target = $region52
      $region51: #{tpu_custom_call.1} parent=47 // pred_region
        _
      $region52: #{tpu_custom_call.1} parent=47 // pred_fallthru
        _
      // Predicated region
      $region53: #{tpu_custom_call.1} parent=47 // pred_check
        %p676 = pneg %p276
      $region54: #{tpu_custom_call.1} parent=47 // pred_check_branch
        %678 = sbr.rel (%p676) target = $region56
      $region55: #{tpu_custom_call.1} parent=47 // pred_region
        _
      $region56: #{tpu_custom_call.1} parent=47 // pred_fallthru
        _
      // Predicated region
      $region57: #{tpu_custom_call.1} parent=47 // pred_check
        %p679 = pneg %p306
      $region58: #{tpu_custom_call.1} parent=47 // pred_check_branch
        %681 = sbr.rel (%p679) target = $region60
      $region59: #{tpu_custom_call.1} parent=47 // pred_region
        _
      $region60: #{tpu_custom_call.1} parent=47 // pred_fallthru
        _
    $region48: #{tpu_custom_call.1} parent=5 // pred_fallthru
      _
    %p682 = scmp.le.s32.totalorder 2, %s16
    // Predicated region
    $region61: #{tpu_custom_call.1} parent=5 // pred_check
      %p683 = pneg %p682
    $region62: #{tpu_custom_call.1} parent=5 // pred_check_branch
      %685 = sbr.rel (%p683) target = $region64
    $region63: #{tpu_custom_call.1} parent=5 // pred_region
      %s686 = ssub.s32 %s16, 2
      // Predicated region
      $region65: #{tpu_custom_call.1} parent=63 // pred_check
        %p687 = pneg %p252
      $region66: #{tpu_custom_call.1} parent=63 // pred_check_branch
        %689 = sbr.rel (%p687) target = $region68
      $region67: #{tpu_custom_call.1} parent=63 // pred_region
        %p690 = scmp.lt.s32.totalorder %s29, 1
        %s691 = scalar_select %p690, %s29, 1
        %p692 = scmp.lt.s32.totalorder %s30, 3
        %s693 = scalar_select %p692, %s30, 3
        %p694 = scmp.lt.s32.totalorder %s31, 1
        %s695 = scalar_select %p694, %s31, 1
        %s696 = smul.addr %s693, 2
        %s697 = sadd.s32 %s695, %s696
        %s698 = smul.addr %s691, 8
        %s699 = sadd.s32 %s697, %s698
        %s700 = smul.addr %s699, 8
        %s701 = scalar_lea.vmem %s7, %s700
      $region68: #{tpu_custom_call.1} parent=63 // pred_fallthru
        _
      // Predicated region
      $region69: #{tpu_custom_call.1} parent=63 // pred_check
        %p702 = pneg %p282
      $region70: #{tpu_custom_call.1} parent=63 // pred_check_branch
        %704 = sbr.rel (%p702) target = $region72
      $region71: #{tpu_custom_call.1} parent=63 // pred_region
        %p705 = scmp.lt.s32.totalorder %s29, 1
        %s706 = scalar_select %p705, %s29, 1
        %p707 = scmp.lt.s32.totalorder %s30, 3
        %s708 = scalar_select %p707, %s30, 3
        %p709 = scmp.lt.s32.totalorder %s31, 1
        %s710 = scalar_select %p709, %s31, 1
        %s711 = smul.addr %s708, 2
        %s712 = sadd.s32 %s710, %s711
        %s713 = smul.addr %s706, 8
        %s714 = sadd.s32 %s712, %s713
        %s715 = smul.addr %s714, 8
        %s716 = scalar_lea.vmem %s8, %s715
      $region72: #{tpu_custom_call.1} parent=63 // pred_fallthru
        _
      // Predicated region
      $region73: #{tpu_custom_call.1} parent=63 // pred_check
        %p717 = pneg %p312
      $region74: #{tpu_custom_call.1} parent=63 // pred_check_branch
        %719 = sbr.rel (%p717) target = $region76
      $region75: #{tpu_custom_call.1} parent=63 // pred_region
        %p720 = scmp.lt.s32.totalorder %s29, 1
        %s721 = scalar_select %p720, %s29, 1
        %p722 = scmp.lt.s32.totalorder %s30, 3
        %s723 = scalar_select %p722, %s30, 3
        %p724 = scmp.lt.s32.totalorder %s31, 1
        %s725 = scalar_select %p724, %s31, 1
        %s726 = smul.addr %s723, 2
        %s727 = sadd.s32 %s725, %s726
        %s728 = smul.addr %s721, 8
        %s729 = sadd.s32 %s727, %s728
        %s730 = smul.addr %s729, 8
        %s731 = scalar_lea.vmem %s9, %s730
      $region76: #{tpu_custom_call.1} parent=63 // pred_fallthru
        _
    $region64: #{tpu_custom_call.1} parent=5 // pred_fallthru
      _
  $region6: #{tpu_custom_call.1} parent=0 // loop_footer
    %s20 = sadd.s32 1, %s16
  $region7: #{tpu_custom_call.1} parent=0 // loop_footer_branch
    %15 = sbr.rel target = $region3
  $region8: #{tpu_custom_call.1} parent=0 // loop_exit
    _

</llo_original>
